<compile_context>
chip_gen: v6e
topology: v6e:2x2x1
jax: 0.10.0
libtpu: 0.0.40
codegen_flags: <defaults>
</compile_context>

<pallas_src>
import jax
import jax.numpy as jnp
import numpy as np
from jax.experimental import pallas as pl
from jax.experimental.pallas import tpu as pltpu


def _round_up(x: int, m: int) -> int:
    return (x + m - 1) // m * m


def _tpu_vmem_capacity_bytes() -> int:
    """Physical VMEM per TensorCore; conservative fallback if the query is unavailable."""
    try:
        info = pltpu.get_tpu_info()
        cap = getattr(info, "vmem_capacity_bytes", None)
        if cap:
            return int(cap)
    except Exception:
        pass
    return 64 * 1024 * 1024  # v7x per-TC physical VMEM (smallest of the recent generations)


def _num_tensorcores() -> int:
    """2 TensorCores per chip only on v7x; v5e/v6e have 1 (a 2-way split is pure overhead there)."""
    try:
        kind = jax.devices()[0].device_kind.lower()
    except Exception:
        return 1
    return 2 if "v7" in kind else 1


def self_attention_kernel(m_ref, w_ref, b_ref, pool_ref, alpha_ref):
    # m_ref:     (B, TS, D)  VMEM   - current sequence tile of M
    # w_ref:     (1, D)      VMEM   - nn.Linear(D, 1).weight
    # b_ref:     (1, 1)      SMEM   - nn.Linear(D, 1).bias (scalar path)
    # pool_ref:  (B, 1, D)   output - per-split partial pool (resident accumulator across s)
    # alpha_ref: (B, 1, TS)  output - attention weights for this S tile
    s = pl.program_id(1)

    @pl.when(s == 0)
    def _init():
        pool_ref[...] = jnp.zeros_like(pool_ref)

    m = m_ref[...]                                   # (B, TS, D) f32
    bias = b_ref[0, 0]                               # scalar read from SMEM
    B, _, D = m.shape

    # Linear(D, 1) on the MXU: per-batch (1, D) x (TS, D) contracting D -> (B, 1, TS)
    # (same batched form as the flash-attention 'bqd,bkd->bqk' pattern).
    w3 = jnp.broadcast_to(w_ref[...][None, :, :], (B, 1, D))
    scale = jnp.einsum("bod,btd->bot", w3, m,
                       preferred_element_type=jnp.float32) + bias      # (B, 1, TS)

    # Softmax over the BATCH axis (PyTorch F.softmax(..., dim=0)); it is per S column,
    # so tiling / splitting the sequence axis is exact.
    mx = jnp.max(scale, axis=0, keepdims=True)                          # (1, 1, TS)
    e = jnp.exp(scale - mx)                                             # EUP
    denom = jnp.sum(e, axis=0, keepdims=True)                           # (1, 1, TS)
    alpha = e / denom                                                   # exact (no approx recip)
    alpha_ref[...] = alpha

    # Weighted pool on the MXU: (B, 1, TS) x (B, TS, D) -> (B, 1, D), accumulated directly
    # into the resident output block across the sequence tiles.
    pool_ref[...] += jnp.einsum("bot,btd->bod", alpha, m,
                                preferred_element_type=jnp.float32)


def self_attention(M, weight, bias, *, seq_tile=None):
    """M: (B, S, D) f32; weight: (1, D) f32; bias: (1, 1) f32.

    Returns (attn_pool (B, D), alpha (B, 1, S)) matching the PyTorch module.
    seq_tile=None -> tile size derived from the chip's VMEM budget.
    """
    B, S, D = M.shape
    vmem_cap = _tpu_vmem_capacity_bytes()
    n_tc = _num_tensorcores()

    # Per-tile budget from VMEM capacity: ~1/6 of VMEM per (B, TS, D) f32 tile so the
    # double-buffered pair stays around a third of capacity (~10.7 MiB on 64 MiB v7x,
    # capped at 16 MiB on 128 MiB v5e/v6e).  Bigger tiles = fewer per-step bubbles for
    # this HBM-bound kernel.
    max_tile_bytes = max(4 * 1024 * 1024, min(16 * 1024 * 1024, vmem_cap // 6))

    # Sequence tile: multiple of 128 (lane-dense alpha stores / (8,128) rule).
    ts_full = _round_up(S, 128)
    ts = ts_full if seq_tile is None else min(_round_up(seq_tile, 128), ts_full)
    while ts > 128 and B * ts * D * 4 > max_tile_bytes:
        ts -= 128

    # 2-way sequence split across TensorCores only on 2-TC chips (v7x); always realized
    # there (pad S up) as long as there are at least two tiles' worth of sequence.
    n_splits = 1
    if n_tc >= 2 and ts_full >= 256:
        n_splits = 2
        ts = min(ts, _round_up((S + 1) // 2, 128))

    # Zero-pad S so it divides into n_splits * ts. Zero rows give zero pool contribution
    # (alpha_pad * 0 == 0) and their alpha columns are sliced off below.
    chunk = n_splits * ts
    S_pad = _round_up(S, chunk)
    M_in = jnp.pad(M, ((0, 0), (0, S_pad - S), (0, 0))) if S_pad != S else M

    n_tiles = S_pad // ts
    tiles_per_split = n_tiles // n_splits

    # Scoped-VMEM request: double-buffered M tiles + alpha blocks + resident pool + weight,
    # clamped to [16 MiB, 3/4 of physical VMEM] (v5e's default scoped limit is only 16 MiB).
    tile_bytes = B * ts * D * 4
    needed = (2 * tile_bytes          # double-buffered M tiles
              + 2 * B * ts * 4        # alpha output blocks
              + 2 * B * D * 4         # resident pool block
              + 2 * D * 4             # weight
              + (2 << 20))            # slack
    vmem_limit = int(min(max(needed, 16 * 1024 * 1024), (vmem_cap * 3) // 4))

    pool_partial, alpha_pad = pl.pallas_call(
        self_attention_kernel,
        out_shape=(
            jax.ShapeDtypeStruct((n_splits, B, 1, D), jnp.float32),
            jax.ShapeDtypeStruct((B, 1, S_pad), jnp.float32),
        ),
        grid=(n_splits, tiles_per_split),
        in_specs=[
            pl.BlockSpec((B, ts, D), lambda p, s: (0, p * tiles_per_split + s, 0)),
            pl.BlockSpec((1, D), lambda p, s: (0, 0)),
            pl.BlockSpec(memory_space=pltpu.MemorySpace.SMEM),
        ],
        out_specs=(
            pl.BlockSpec((None, B, 1, D), lambda p, s: (p, 0, 0, 0)),
            pl.BlockSpec((B, 1, ts), lambda p, s: (0, 0, p * tiles_per_split + s)),
        ),
        compiler_params=pltpu.CompilerParams(
            dimension_semantics=("parallel", "arbitrary"),
            vmem_limit_bytes=vmem_limit,
        ),
    )(M_in, weight, bias)

    attn_pool = jnp.sum(pool_partial, axis=0)[:, 0, :]   # combine per-split partial sums -> (B, D)
    alpha = alpha_pad[:, :, :S]                          # (B, 1, S)
    return attn_pool, alpha


def self_attention_reference(M, weight, bias):
    """Pure-JAX reference mirroring the PyTorch code path."""
    scale = jnp.einsum("bsd,od->bso", M, weight) + bias[0, 0]   # (B, S, 1)
    alpha = jax.nn.softmax(scale, axis=0)                        # softmax over batch dim
    alpha = jnp.transpose(alpha, (0, 2, 1))                      # (B, 1, S)
    attn_pool = jnp.einsum("bos,bsd->bod", alpha, M)[:, 0, :]    # (B, D)
    return attn_pool, alpha


def _run_case(key, B, S, D, seq_tile):
    k_m, k_w, k_b = jax.random.split(key, 3)
    M = jax.random.normal(k_m, (B, S, D), dtype=jnp.float32)
    bound = 1.0 / np.sqrt(D)   # deterministic stand-in for nn.Linear(D, 1) init
    weight = jax.random.uniform(k_w, (1, D), minval=-bound, maxval=bound, dtype=jnp.float32)
    bias = jax.random.uniform(k_b, (1, 1), minval=-bound, maxval=bound, dtype=jnp.float32)

    pool, alpha = self_attention(M, weight, bias, seq_tile=seq_tile)
    pool = jax.block_until_ready(pool)
    alpha = jax.block_until_ready(alpha)

    pool_ref, alpha_ref = self_attention_reference(M, weight, bias)

    assert pool.shape == (B, D), pool.shape
    assert alpha.shape == (B, 1, S), alpha.shape
    np.testing.assert_allclose(np.asarray(pool), np.asarray(pool_ref), rtol=2e-3, atol=2e-3)
    np.testing.assert_allclose(np.asarray(alpha), np.asarray(alpha_ref), rtol=2e-3, atol=2e-3)


if __name__ == "__main__":
    key = jax.random.PRNGKey(0)
    k1, k2, k3 = jax.random.split(key, 3)

    # Multi-tile reduction over the sequence axis (forced small tile).
    _run_case(k1, B=4, S=512, D=128, seq_tile=128)

    # Ragged case: S not a multiple of the tile -> zero-padding path.
    _run_case(k2, B=3, S=200, D=64, seq_tile=128)

    # Auto tile-size path (derived from the VMEM budget).
    _run_case(k3, B=2, S=384, D=128, seq_tile=None)

    print("KERNEL_OK")
</pallas_src>

<mosaic_0001>
module attributes {stable_mosaic.version = 11 : i64} {
  func.func @self_attention_kernel(%arg0: i32, %arg1: i32, %arg2: memref<4x128x128xf32, #tpu.memory_space<vmem>>, %arg3: memref<1x128xf32, #tpu.memory_space<vmem>>, %arg4: memref<1x1xf32, #tpu.memory_space<smem>>, %arg5: memref<1x4x1x128xf32, #tpu.memory_space<vmem>>, %arg6: memref<4x1x128xf32, #tpu.memory_space<vmem>>) attributes {dimension_semantics = [#tpu.dimension_semantics<parallel>, #tpu.dimension_semantics<arbitrary>], iteration_bounds = array<i64: 1, 4>, scalar_prefetch = 0 : i64, scratch_operands = 0 : i64, tpu.core_type = #tpu.core_type<tc>, window_params = [{transform_indices = @transform_0, window_bounds = array<i64: 4, 128, 128>}, {pipeline_mode = #tpu.pipeline_mode<synchronous>, transform_indices = @transform_1, window_bounds = array<i64: 1, 128>}, {transform_indices = @transform_2, window_bounds = array<i64: 1, 1>}, {transform_indices = @transform_3, window_bounds = array<i64: 1, 4, 1, 128>}, {transform_indices = @transform_4, window_bounds = array<i64: 4, 1, 128>}]} {
    %c0_i32 = arith.constant 0 : i32
    %0 = arith.cmpi eq, %arg1, %c0_i32 : i32
    %1 = arith.extui %0 : i1 to i32
    %c0_i32_0 = arith.constant 0 : i32
    %2 = arith.cmpi ne, %1, %c0_i32_0 : i32
    scf.if %2 {
      %cst_21 = arith.constant 0.000000e+00 : f32
      %29 = vector.broadcast %cst_21 : f32 to vector<4x1x128xf32>
      %c0_22 = arith.constant 0 : index
      %c0_23 = arith.constant 0 : index
      %c0_24 = arith.constant 0 : index
      %c0_25 = arith.constant 0 : index
      %30 = vector.load %arg5[%c0_22, %c0_23, %c0_24, %c0_25] : memref<1x4x1x128xf32, #tpu.memory_space<vmem>>, vector<1x4x1x128xf32>
      %31 = vector.shape_cast %30 : vector<1x4x1x128xf32> to vector<4x1x128xf32>
      %32 = vector.shape_cast %29 : vector<4x1x128xf32> to vector<1x4x1x128xf32>
      tpu.vector_store %arg5[%c0_22, %c0_23, %c0_24, %c0_25], %32 {strides = array<i32>} : memref<1x4x1x128xf32, #tpu.memory_space<vmem>>, vector<1x4x1x128xf32>,
    } else {
    }
    %c0 = arith.constant 0 : index
    %c0_1 = arith.constant 0 : index
    %c0_2 = arith.constant 0 : index
    %3 = vector.load %arg2[%c0, %c0_1, %c0_2] : memref<4x128x128xf32, #tpu.memory_space<vmem>>, vector<4x128x128xf32>
    %c0_3 = arith.constant 0 : index
    %c0_4 = arith.constant 0 : index
    %4 = memref.load %arg4[%c0_3, %c0_4] : memref<1x1xf32, #tpu.memory_space<smem>>
    %c0_5 = arith.constant 0 : index
    %c0_6 = arith.constant 0 : index
    %5 = vector.load %arg3[%c0_5, %c0_6] : memref<1x128xf32, #tpu.memory_space<vmem>>, vector<1x128xf32>
    %6 = vector.shape_cast %5 : vector<1x128xf32> to vector<1x1x128xf32>
    %7 = vector.shape_cast %6 : vector<1x1x128xf32> to vector<1x1x128xf32>
    %8 = vector.broadcast %7 : vector<1x1x128xf32> to vector<4x1x128xf32>
    "tpu.trace_start"() <{level = 10 : i32, message = "bod,btd->bot"}> : () -> ()
    %cst = arith.constant dense<0.000000e+00> : vector<4x1x128xf32>
    %9 = tpu.matmul %8, %3, %cst {dimension_numbers = #tpu.dot_dimension_numbers<[2], [2], [1], [1], [0, 0, 0, 1, 1, 1], [0], [0]>} : vector<4x1x128xf32>, vector<4x128x128xf32>, vector<4x1x128xf32> -> vector<4x1x128xf32>
    "tpu.trace_stop"() : () -> ()
    %10 = vector.broadcast %4 : f32 to vector<4x1x128xf32>
    %11 = arith.addf %9, %10 : vector<4x1x128xf32>
    %cst_7 = arith.constant dense<0xFF800000> : vector<1x128xf32>
    %12 = vector.multi_reduction <maximumf>, %11, %cst_7 [0] : vector<4x1x128xf32> to vector<1x128xf32>
    %13 = vector.shape_cast %12 : vector<1x128xf32> to vector<1x1x128xf32>
    %14 = vector.broadcast %13 : vector<1x1x128xf32> to vector<4x1x128xf32>
    %15 = arith.subf %11, %14 : vector<4x1x128xf32>
    %16 = math.exp %15 : vector<4x1x128xf32>
    %cst_8 = arith.constant dense<0.000000e+00> : vector<1x128xf32>
    %17 = vector.multi_reduction <add>, %16, %cst_8 [0] : vector<4x1x128xf32> to vector<1x128xf32>
    %18 = vector.shape_cast %17 : vector<1x128xf32> to vector<1x1x128xf32>
    %19 = vector.broadcast %18 : vector<1x1x128xf32> to vector<4x1x128xf32>
    %20 = arith.divf %16, %19 : vector<4x1x128xf32>
    %c0_9 = arith.constant 0 : index
    %c0_10 = arith.constant 0 : index
    %c0_11 = arith.constant 0 : index
    %21 = vector.load %arg6[%c0_9, %c0_10, %c0_11] : memref<4x1x128xf32, #tpu.memory_space<vmem>>, vector<4x1x128xf32>
    tpu.vector_store %arg6[%c0_9, %c0_10, %c0_11], %20 {strides = array<i32>} : memref<4x1x128xf32, #tpu.memory_space<vmem>>, vector<4x1x128xf32>,
    %c0_12 = arith.constant 0 : index
    %c0_13 = arith.constant 0 : index
    %c0_14 = arith.constant 0 : index
    %c0_15 = arith.constant 0 : index
    %22 = vector.load %arg5[%c0_12, %c0_13, %c0_14, %c0_15] : memref<1x4x1x128xf32, #tpu.memory_space<vmem>>, vector<1x4x1x128xf32>
    %23 = vector.shape_cast %22 : vector<1x4x1x128xf32> to vector<4x1x128xf32>
    "tpu.trace_start"() <{level = 10 : i32, message = "bot,btd->bod"}> : () -> ()
    %cst_16 = arith.constant dense<0.000000e+00> : vector<4x1x128xf32>
    %24 = tpu.matmul %20, %3, %cst_16 {dimension_numbers = #tpu.dot_dimension_numbers<[2], [1], [1], [2], [0, 0, 0, 1, 1, 2], [0], [0]>} : vector<4x1x128xf32>, vector<4x128x128xf32>, vector<4x1x128xf32> -> vector<4x1x128xf32>
    "tpu.trace_stop"() : () -> ()
    %25 = arith.addf %23, %24 : vector<4x1x128xf32>
    %c0_17 = arith.constant 0 : index
    %c0_18 = arith.constant 0 : index
    %c0_19 = arith.constant 0 : index
    %c0_20 = arith.constant 0 : index
    %26 = vector.load %arg5[%c0_17, %c0_18, %c0_19, %c0_20] : memref<1x4x1x128xf32, #tpu.memory_space<vmem>>, vector<1x4x1x128xf32>
    %27 = vector.shape_cast %26 : vector<1x4x1x128xf32> to vector<4x1x128xf32>
    %28 = vector.shape_cast %25 : vector<4x1x128xf32> to vector<1x4x1x128xf32>
    tpu.vector_store %arg5[%c0_17, %c0_18, %c0_19, %c0_20], %28 {strides = array<i32>} : memref<1x4x1x128xf32, #tpu.memory_space<vmem>>, vector<1x4x1x128xf32>,
    return
  }
  func.func @transform_0(%arg0: i32, %arg1: i32) -> (i32, i32, i32) {
    %c4_i32 = arith.constant 4 : i32
    %0 = arith.muli %arg0, %c4_i32 : i32
    %1 = arith.addi %0, %arg1 : i32
    %c0_i32 = arith.constant 0 : i32
    %c0_i32_0 = arith.constant 0 : i32
    %c0_i32_1 = arith.constant 0 : i32
    return %c0_i32, %1, %c0_i32_0 : i32, i32, i32
  }
  func.func @transform_1(%arg0: i32, %arg1: i32) -> (i32, i32) {
    %c0_i32 = arith.constant 0 : i32
    %c0_i32_0 = arith.constant 0 : i32
    %c0_i32_1 = arith.constant 0 : i32
    return %c0_i32, %c0_i32_0 : i32, i32
  }
  func.func @transform_2(%arg0: i32, %arg1: i32) -> (i32, i32) {
    %c0_i32 = arith.constant 0 : i32
    %c0_i32_0 = arith.constant 0 : i32
    %c0_i32_1 = arith.constant 0 : i32
    return %c0_i32, %c0_i32_0 : i32, i32
  }
  func.func @transform_3(%arg0: i32, %arg1: i32) -> (i32, i32, i32, i32) {
    %c0_i32 = arith.constant 0 : i32
    %c0_i32_0 = arith.constant 0 : i32
    %c0_i32_1 = arith.constant 0 : i32
    %c0_i32_2 = arith.constant 0 : i32
    return %arg0, %c0_i32, %c0_i32_0, %c0_i32_1 : i32, i32, i32, i32
  }
  func.func @transform_4(%arg0: i32, %arg1: i32) -> (i32, i32, i32) {
    %c4_i32 = arith.constant 4 : i32
    %0 = arith.muli %arg0, %c4_i32 : i32
    %1 = arith.addi %0, %arg1 : i32
    %c0_i32 = arith.constant 0 : i32
    %c0_i32_0 = arith.constant 0 : i32
    %c0_i32_1 = arith.constant 0 : i32
    return %c0_i32, %c0_i32_0, %1 : i32, i32, i32
  }
}

</mosaic_0001>

<llo_original>
// kernel: tpu_custom_call.1
$region0: #{tpu_custom_call.1}
  #allocation0 [shape = 'u32[]', space=smem, size = 0x4, offset = 0x4, fixed_abs, tag = 'smem constant byte address 0x4 - core index']
  #allocation1 [shape = 'u32[144,128]{1,0:T(1,128)}', space=vmem, size = 0x12000, scoped, tag = 'internal scratch']
  #allocation2 [shape = 'f32[1,1]{1,0:T(1,128)S(6)}', space=smem, size = 0x200, scoped, tag = 'scoped memory for tpu_custom_call.1']
  #allocation9 [shape = 's32[]', space=sflag, size = 0x4, offset = 0, fixed_abs, tag = 'sflag constant byte address 0x0 - dummy sync flag']
  %s0 = inlined_call_operand.hbm [shape: f32[4,512,128], index: 0, kind: input, shape index: {}]
  %s1 = inlined_call_operand.vmem [shape: f32[1,128], index: 1, kind: input, shape index: {}]
  %s2 = inlined_call_operand.<no memory space> [shape: f32[1,1], index: 2, kind: input, shape index: {}]
  %s3 = inlined_call_operand.hbm [shape: f32[1,4,1,128], index: 3, kind: output, shape index: {0}]
  %s4 = inlined_call_operand.hbm [shape: f32[4,1,512], index: 4, kind: output, shape index: {1}]
  %5 = xla_tuple %s3, %s4
  %s6 = sld [smem:[#allocation0]]
  $region61: #{tpu_custom_call.1} parent=0
    _
  %s8 = ssub.s32 1, %s6
  %s9 = scalar_select 0, %s8, %s6
  %10 = sst [smem:[#allocation2]] %s2
  $region1: #{tpu_custom_call.1} parent=0
    #allocation3 [shape = 'u8[524288]{0}', space=vmem, size = 0x80000, scoped, tag = 'input window, operand 0']
    #allocation4 [shape = 's32[2]{0}', space=sflag, size = 0x8, scoped, tag = 'scoped memory for tpu_custom_call.1']
    #allocation5 [shape = 's32[2]{0}', space=sflag, size = 0x8, scoped, tag = 'scoped memory for tpu_custom_call.1']
    #allocation6 [shape = 'u8[2048]{0}', space=vmem, size = 0x800, scoped, tag = 'output window, operand 0, single buffered']
    #allocation7 [shape = 'u8[4096]{0}', space=vmem, size = 0x1000, scoped, tag = 'output window, operand 1']
    #allocation8 [shape = 's32[2]{0}', space=sflag, size = 0x8, scoped, tag = 'scoped memory for tpu_custom_call.1']
    %11 = vsyncpa [#allocation4], 0
    %s12 = scalar_lea.sflag [#allocation4], 1
    %13 = vsyncpa %s12, 0
    %14 = vsyncpa [#allocation5], 0
    %15 = vsyncpa [#allocation8], 0
    %s16 = scalar_lea.sflag [#allocation8], 1
    %17 = vsyncpa %s16, 0
    loop: start=0, step=1, limit=6
    $region2: #{tpu_custom_call.1} parent=1 // loop_pre_header
      _
    $region3: #{tpu_custom_call.1} parent=1 // loop_header
      %s19 = sphi 0, %s23
      %p20 = scmp.ge.s32.totalorder %s19, 6
      %s26 = sphi 0, %s38
      %s27 = sphi 0, %s34
      %s28 = sphi 0, %s26
      %s29 = sphi 0, %s27
      %s30 = sphi 0, %s28
      %s31 = sphi 0, %s29
      %s45 = sphi 0, %s47
      %s48 = sphi 0, %s45
      %s49 = sphi 0, %s48
      %s65 = sphi 0, %s49
      %s69 = sphi 0, %s69
      %s71 = sphi 0, %s69
      %s72 = sphi 0, %s71
      %s86 = sphi 0, %s72
      %s90 = sphi 0, %s90
      %s92 = sphi 0, %s90
      %s93 = sphi 0, %s92
      %s107 = sphi 0, %s93
      %s113 = sphi 0, %s115
      %s116 = sphi 0, %s113
      %s117 = sphi 0, %s116
      %s133 = sphi 0, %s117
      %s143 = sphi 0, %s145
      %s146 = sphi 0, %s143
      %s147 = sphi 0, %s146
      %s163 = sphi 0, %s147
    $region4: #{tpu_custom_call.1} parent=1 // loop_header_branch
      %22 = sbr.rel (%p20) target = $region8
    $region5: #{tpu_custom_call.1} parent=1 // loop_body
      %s24 = ssub.s32 %s19, 1
      %s25 = ssub.s32 %s19, 2
      %s32 = sadd.s32 1, %s27
      %p33 = scmp.ge.s32.totalorder %s32, 4
      %s34 = scalar_select %p33, 0, %s32
      %s35 = sadd.s32 1, %s26
      %s36 = scalar_select %p33, %s35, %s26
      %p37 = scmp.ge.s32.totalorder %s36, 1
      %s38 = scalar_select %p37, 0, %s36
      %s39 = smul.u32 %s26, 4
      %s40 = sadd.s32 %s39, %s27
      %s41 = smul.u32 %s38, 4
      %s42 = sadd.s32 %s41, %s34
      %s43 = ssub.s32 %s40, %s42
      %p44 = scmp.eq.s32.totalorder %s43, 0
      %s46 = sadd.s32 %s45, 1
      %s47 = scalar_select %p44, %s45, %s46
      %p50 = pneg %p44
      %p51 = scmp.eq.s32.totalorder %s19, 3
      %p52 = por %p50, %p51
      %p53 = scmp.ne.s32.totalorder %s45, %s48
      %p54 = scmp.eq.s32.totalorder %s19, 0
      %p55 = por %p53, %p54
      %p56 = scmp.ne.s32.totalorder %s45, %s48
      %p57 = scmp.eq.s32.totalorder %s24, 3
      %p58 = por %p56, %p57
      %p59 = scmp.ne.s32.totalorder %s48, %s49
      %p60 = scmp.eq.s32.totalorder %s24, 0
      %p61 = por %p59, %p60
      %p62 = scmp.ne.s32.totalorder %s48, %s49
      %p63 = scmp.eq.s32.totalorder %s25, 3
      %p64 = por %p62, %p63
      %p66 = scmp.ne.s32.totalorder %s49, %s65
      %p67 = scmp.eq.s32.totalorder %s25, 0
      %p68 = por %p66, %p67
      %s70 = sadd.s32 %s69, 1
      %p73 = scmp.eq.s32.totalorder %s19, 3
      %p74 = scmp.ne.s32.totalorder %s69, %s71
      %p75 = scmp.eq.s32.totalorder %s19, 0
      %p76 = por %p74, %p75
      %p77 = scmp.ne.s32.totalorder %s69, %s71
      %p78 = scmp.eq.s32.totalorder %s24, 3
      %p79 = por %p77, %p78
      %p80 = scmp.ne.s32.totalorder %s71, %s72
      %p81 = scmp.eq.s32.totalorder %s24, 0
      %p82 = por %p80, %p81
      %p83 = scmp.ne.s32.totalorder %s71, %s72
      %p84 = scmp.eq.s32.totalorder %s25, 3
      %p85 = por %p83, %p84
      %p87 = scmp.ne.s32.totalorder %s72, %s86
      %p88 = scmp.eq.s32.totalorder %s25, 0
      %p89 = por %p87, %p88
      %s91 = sadd.s32 %s90, 1
      %p94 = scmp.eq.s32.totalorder %s19, 3
      %p95 = scmp.ne.s32.totalorder %s90, %s92
      %p96 = scmp.eq.s32.totalorder %s19, 0
      %p97 = por %p95, %p96
      %p98 = scmp.ne.s32.totalorder %s90, %s92
      %p99 = scmp.eq.s32.totalorder %s24, 3
      %p100 = por %p98, %p99
      %p101 = scmp.ne.s32.totalorder %s92, %s93
      %p102 = scmp.eq.s32.totalorder %s24, 0
      %p103 = por %p101, %p102
      %p104 = scmp.ne.s32.totalorder %s92, %s93
      %p105 = scmp.eq.s32.totalorder %s25, 3
      %p106 = por %p104, %p105
      %p108 = scmp.ne.s32.totalorder %s93, %s107
      %p109 = scmp.eq.s32.totalorder %s25, 0
      %p110 = por %p108, %p109
      %s111 = ssub.s32 %s26, %s38
      %p112 = scmp.eq.s32.totalorder %s111, 0
      %s114 = sadd.s32 %s113, 1
      %s115 = scalar_select %p112, %s113, %s114
      %p118 = pneg %p112
      %p119 = scmp.eq.s32.totalorder %s19, 3
      %p120 = por %p118, %p119
      %p121 = scmp.ne.s32.totalorder %s113, %s116
      %p122 = scmp.eq.s32.totalorder %s19, 0
      %p123 = por %p121, %p122
      %p124 = scmp.ne.s32.totalorder %s113, %s116
      %p125 = scmp.eq.s32.totalorder %s24, 3
      %p126 = por %p124, %p125
      %p127 = scmp.ne.s32.totalorder %s116, %s117
      %p128 = scmp.eq.s32.totalorder %s24, 0
      %p129 = por %p127, %p128
      %p130 = scmp.ne.s32.totalorder %s116, %s117
      %p131 = scmp.eq.s32.totalorder %s25, 3
      %p132 = por %p130, %p131
      %p134 = scmp.ne.s32.totalorder %s117, %s133
      %p135 = scmp.eq.s32.totalorder %s25, 0
      %p136 = por %p134, %p135
      %s137 = smul.u32 %s26, 4
      %s138 = sadd.s32 %s137, %s27
      %s139 = smul.u32 %s38, 4
      %s140 = sadd.s32 %s139, %s34
      %s141 = ssub.s32 %s138, %s140
      %p142 = scmp.eq.s32.totalorder %s141, 0
      %s144 = sadd.s32 %s143, 1
      %s145 = scalar_select %p142, %s143, %s144
      %p148 = pneg %p142
      %p149 = scmp.eq.s32.totalorder %s19, 3
      %p150 = por %p148, %p149
      %p151 = scmp.ne.s32.totalorder %s143, %s146
      %p152 = scmp.eq.s32.totalorder %s19, 0
      %p153 = por %p151, %p152
      %p154 = scmp.ne.s32.totalorder %s143, %s146
      %p155 = scmp.eq.s32.totalorder %s24, 3
      %p156 = por %p154, %p155
      %p157 = scmp.ne.s32.totalorder %s146, %s147
      %p158 = scmp.eq.s32.totalorder %s24, 0
      %p159 = por %p157, %p158
      %p160 = scmp.ne.s32.totalorder %s146, %s147
      %p161 = scmp.eq.s32.totalorder %s25, 3
      %p162 = por %p160, %p161
      %p164 = scmp.ne.s32.totalorder %s147, %s163
      %p165 = scmp.eq.s32.totalorder %s25, 0
      %p166 = por %p164, %p165
      %p167 = scmp.le.s32.totalorder 1, %s19
      %p168 = scmp.lt.s32.totalorder %s19, 5
      %p169 = pnand %p167, %p168
      %p170 = pneg %p169
      // Predicated region
      $region9: #{tpu_custom_call.1} parent=5 // pred_check
        _
      $region10: #{tpu_custom_call.1} parent=5 // pred_check_branch
        %172 = sbr.rel (%p169) target = $region12
      $region11: #{tpu_custom_call.1} parent=5 // pred_region
        %s173 = ssub.s32 %s19, 1
        // Predicated region
        $region13: #{tpu_custom_call.1} parent=11 // pred_check
          %p174 = pneg %p82
        $region14: #{tpu_custom_call.1} parent=11 // pred_check_branch
          %176 = sbr.rel (%p174) target = $region16
        $region15: #{tpu_custom_call.1} parent=11 // pred_region
          _
        $region16: #{tpu_custom_call.1} parent=11 // pred_fallthru
          _
        // Predicated region
        $region17: #{tpu_custom_call.1} parent=11 // pred_check
          %p177 = pneg %p103
        $region18: #{tpu_custom_call.1} parent=11 // pred_check_branch
          %179 = sbr.rel (%p177) target = $region20
        $region19: #{tpu_custom_call.1} parent=11 // pred_region
          _
        $region20: #{tpu_custom_call.1} parent=11 // pred_fallthru
          _
      $region12: #{tpu_custom_call.1} parent=5 // pred_fallthru
        _
      %p180 = scmp.lt.s32.totalorder %s19, 4
      // Predicated region
      $region21: #{tpu_custom_call.1} parent=5 // pred_check
        %p181 = pneg %p180
      $region22: #{tpu_custom_call.1} parent=5 // pred_check_branch
        %183 = sbr.rel (%p181) target = $region24
      $region23: #{tpu_custom_call.1} parent=5 // pred_region
        // Predicated region
        $region25: #{tpu_custom_call.1} parent=23 // pred_check
          %p184 = pneg %p55
        $region26: #{tpu_custom_call.1} parent=23 // pred_check_branch
          %186 = sbr.rel (%p184) target = $region28
        $region27: #{tpu_custom_call.1} parent=23 // pred_region
          #allocation10 [shape = 'u32[6]{0}', space=smem, size = 0x18, scoped, tag = 'DMA stride descriptor']
          %s187 = sand.u32 %s45, 1
          %s188 = scalar_lea.sflag [#allocation4], %s187
          %s189 = sand.u32 %s45, 1
          %s190 = smul.addr %s189, 512
          %s191 = scalar_lea.vmem [#allocation3], %s190
          %s192 = smul.u32 %s26, 4
          %s193 = sadd.s32 %s192, %s27
          %s194 = smul.u32 16, %s193
          %s196 = ssub.s32 8192, 8192
          %197 = vsyncadd %s188, %s196
          %s198 = smul.addr %s194, 128
          %s199 = scalar_lea.hbm %s0, %s198
          %s201 = sshll.u32 1, 14
          %s202 = sxor.u32 4294967295, %s201
          %s204 = sld [smem:[#allocation0]]
          %s205 = sadd.s32 2, %s204
          %s207 = sshll.u32 7, 26
          %s208 = sxor.u32 4294967295, %s207
          %s209 = sand.u32 0, %s208
          %s210 = sshll.u32 %s205, 26
          %s211 = sor.u32 %s209, %s210
          %s212 = sshll.u32 %s191, 4
          %s213 = int_to_ptr.vmem [resolvable:$true] %s212
          %219 = sst [smem:[#allocation10]] 8192
          %s220 = scalar_lea.smem [#allocation10], 1
          %221 = sst [smem:[%s220]] 2048
          %s222 = scalar_lea.smem [#allocation10], 2
          %223 = sst [smem:[%s222]] 16
          %s224 = scalar_lea.smem [#allocation10], 3
          %225 = sst [smem:[%s224]] 128
          %s226 = scalar_lea.smem [#allocation10], 4
          %227 = sst [smem:[%s226]] 128
          %s228 = scalar_lea.smem [#allocation10], 5
          %229 = sst [smem:[%s228]] 8
          %231 = dma.general %s199, 8192, %s213, %s188, 131072, [#allocation10], %s211, 0
        $region28: #{tpu_custom_call.1} parent=23 // pred_fallthru
          _
      $region24: #{tpu_custom_call.1} parent=5 // pred_fallthru
        _
      %p232 = scmp.le.s32.totalorder 1, %s19
      %p233 = scmp.lt.s32.totalorder %s19, 5
      %p234 = pnand %p232, %p233
      %p235 = pneg %p234
      // Predicated region
      $region29: #{tpu_custom_call.1} parent=5 // pred_check
        _
      $region30: #{tpu_custom_call.1} parent=5 // pred_check_branch
        %237 = sbr.rel (%p234) target = $region32
      $region31: #{tpu_custom_call.1} parent=5 // pred_region
        %s238 = ssub.s32 %s19, 1
        %s239 = sand.u32 %s48, 1
        %s240 = scalar_lea.sflag [#allocation4], %s239
        %s241 = sand.u32 %s48, 1
        %s242 = smul.addr %s241, 512
        %s243 = scalar_lea.vmem [#allocation3], %s242
        // Predicated region
        $region33: #{tpu_custom_call.1} parent=31 // pred_check
          %p244 = pneg %p61
        $region34: #{tpu_custom_call.1} parent=31 // pred_check_branch
          %246 = sbr.rel (%p244) target = $region36
        $region35: #{tpu_custom_call.1} parent=31 // pred_region
          %247 = dma.done %s240, 8192
        $region36: #{tpu_custom_call.1} parent=31 // pred_fallthru
          _
        %s248 = sand.u32 %s48, 1
        %s249 = scalar_lea.sflag [#allocation4], %s248
        %s250 = sand.u32 %s48, 1
        %s251 = smul.addr %s250, 512
        %s252 = scalar_lea.vmem [#allocation3], %s251
        %p253 = pneg %p61
        %p254 = pneg %p58
        %p255 = pneg %p82
        %p256 = pneg %p79
        %p257 = pneg %p103
        %p258 = pneg %p100
        %p259 = pneg %p129
        %p260 = pneg %p126
        %p261 = pneg %p159
        %p262 = pneg %p156
        %s263 = sand.u32 %s146, 1
        %s264 = scalar_lea.sflag [#allocation8], %s263
        %s265 = sand.u32 %s146, 1
        %s266 = smul.addr %s265, 4
        %s267 = scalar_lea.vmem [#allocation7], %s266
        %s268 = smul.u32 %s28, 4
        %s269 = sadd.s32 %s268, %s29
        %s270 = smul.u32 16, %s269
        %s271 = smul.u32 %s28, 4
        %s272 = sadd.s32 %s271, %s29
        %p273 = scmp.eq.s32.totalorder %s29, 0
        // Predicated region
        $region37: #{tpu_custom_call.1} parent=31 // pred_check
          %p274 = pneg %p273
        $region38: #{tpu_custom_call.1} parent=31 // pred_check_branch
          %276 = sbr.rel (%p274) target = $region40
        $region39: #{tpu_custom_call.1} parent=31 // pred_region
          %277 = vst [vmem:[#allocation6] sm:$0x1] 0.0
          %278 = vst [vmem:[#allocation6 + $0x1] sm:$0x1] 0.0
          %279 = vst [vmem:[#allocation6 + $0x2] sm:$0x1] 0.0
          %280 = vst [vmem:[#allocation6 + $0x3] sm:$0x1] 0.0
        $region40: #{tpu_custom_call.1} parent=31 // pred_fallthru
          _
        %v281 = vld [vmem:[%s243] sm:$0xff]
        %v282 = vld [vmem:[%s243 + $0x8] sm:$0xff]
        %v283 = vld [vmem:[%s243 + $0x10] sm:$0xff]
        %v284 = vld [vmem:[%s243 + $0x18] sm:$0xff]
        %v285 = vld [vmem:[%s243 + $0x20] sm:$0xff]
        %v286 = vld [vmem:[%s243 + $0x28] sm:$0xff]
        %v287 = vld [vmem:[%s243 + $0x30] sm:$0xff]
        %v288 = vld [vmem:[%s243 + $0x38] sm:$0xff]
        %v289 = vld [vmem:[%s243 + $0x40] sm:$0xff]
        %v290 = vld [vmem:[%s243 + $0x48] sm:$0xff]
        %v291 = vld [vmem:[%s243 + $0x50] sm:$0xff]
        %v292 = vld [vmem:[%s243 + $0x58] sm:$0xff]
        %v293 = vld [vmem:[%s243 + $0x60] sm:$0xff]
        %v294 = vld [vmem:[%s243 + $0x68] sm:$0xff]
        %v295 = vld [vmem:[%s243 + $0x70] sm:$0xff]
        %v296 = vld [vmem:[%s243 + $0x78] sm:$0xff]
        %v297 = vld [vmem:[%s243 + $0x80] sm:$0xff]
        %v298 = vld [vmem:[%s243 + $0x88] sm:$0xff]
        %v299 = vld [vmem:[%s243 + $0x90] sm:$0xff]
        %v300 = vld [vmem:[%s243 + $0x98] sm:$0xff]
        %v301 = vld [vmem:[%s243 + $0xa0] sm:$0xff]
        %v302 = vld [vmem:[%s243 + $0xa8] sm:$0xff]
        %v303 = vld [vmem:[%s243 + $0xb0] sm:$0xff]
        %v304 = vld [vmem:[%s243 + $0xb8] sm:$0xff]
        %v305 = vld [vmem:[%s243 + $0xc0] sm:$0xff]
        %v306 = vld [vmem:[%s243 + $0xc8] sm:$0xff]
        %v307 = vld [vmem:[%s243 + $0xd0] sm:$0xff]
        %v308 = vld [vmem:[%s243 + $0xd8] sm:$0xff]
        %v309 = vld [vmem:[%s243 + $0xe0] sm:$0xff]
        %v310 = vld [vmem:[%s243 + $0xe8] sm:$0xff]
        %v311 = vld [vmem:[%s243 + $0xf0] sm:$0xff]
        %v312 = vld [vmem:[%s243 + $0xf8] sm:$0xff]
        %v313 = vld [vmem:[%s243 + $0x100] sm:$0xff]
        %v314 = vld [vmem:[%s243 + $0x108] sm:$0xff]
        %v315 = vld [vmem:[%s243 + $0x110] sm:$0xff]
        %v316 = vld [vmem:[%s243 + $0x118] sm:$0xff]
        %v317 = vld [vmem:[%s243 + $0x120] sm:$0xff]
        %v318 = vld [vmem:[%s243 + $0x128] sm:$0xff]
        %v319 = vld [vmem:[%s243 + $0x130] sm:$0xff]
        %v320 = vld [vmem:[%s243 + $0x138] sm:$0xff]
        %v321 = vld [vmem:[%s243 + $0x140] sm:$0xff]
        %v322 = vld [vmem:[%s243 + $0x148] sm:$0xff]
        %v323 = vld [vmem:[%s243 + $0x150] sm:$0xff]
        %v324 = vld [vmem:[%s243 + $0x158] sm:$0xff]
        %v325 = vld [vmem:[%s243 + $0x160] sm:$0xff]
        %v326 = vld [vmem:[%s243 + $0x168] sm:$0xff]
        %v327 = vld [vmem:[%s243 + $0x170] sm:$0xff]
        %v328 = vld [vmem:[%s243 + $0x178] sm:$0xff]
        %v329 = vld [vmem:[%s243 + $0x180] sm:$0xff]
        %v330 = vld [vmem:[%s243 + $0x188] sm:$0xff]
        %v331 = vld [vmem:[%s243 + $0x190] sm:$0xff]
        %v332 = vld [vmem:[%s243 + $0x198] sm:$0xff]
        %v333 = vld [vmem:[%s243 + $0x1a0] sm:$0xff]
        %v334 = vld [vmem:[%s243 + $0x1a8] sm:$0xff]
        %v335 = vld [vmem:[%s243 + $0x1b0] sm:$0xff]
        %v336 = vld [vmem:[%s243 + $0x1b8] sm:$0xff]
        %v337 = vld [vmem:[%s243 + $0x1c0] sm:$0xff]
        %v338 = vld [vmem:[%s243 + $0x1c8] sm:$0xff]
        %v339 = vld [vmem:[%s243 + $0x1d0] sm:$0xff]
        %v340 = vld [vmem:[%s243 + $0x1d8] sm:$0xff]
        %v341 = vld [vmem:[%s243 + $0x1e0] sm:$0xff]
        %v342 = vld [vmem:[%s243 + $0x1e8] sm:$0xff]
        %v343 = vld [vmem:[%s243 + $0x1f0] sm:$0xff]
        %v344 = vld [vmem:[%s243 + $0x1f8] sm:$0xff]
        %s345 = sld [smem:[#allocation2]]
        %v346 = vld [vmem:[%s1] sm:$0x1]
        %v347 = vstv %s345
        %348 = vmatprep.subr.mxu0 0.0
        %349 = vmatpush1.xpose.msra.mxu0 %v296
        %350 = vmatprep.subr.mxu0 0.0
        %351 = vmatpush1.xpose.msra.mxu0 %v295
        %352 = vmatprep.subr.mxu0 0.0
        %353 = vmatpush1.xpose.msra.mxu0 %v294
        %354 = vmatprep.subr.mxu0 0.0
        %355 = vmatpush1.xpose.msra.mxu0 %v293
        %356 = vmatprep.subr.mxu0 0.0
        %357 = vmatpush1.xpose.msra.mxu0 %v292
        %358 = vmatprep.subr.mxu0 0.0
        %359 = vmatpush1.xpose.msra.mxu0 %v291
        %360 = vmatprep.subr.mxu0 0.0
        %361 = vmatpush1.xpose.msra.mxu0 %v290
        %362 = vmatprep.subr.mxu0 0.0
        %363 = vmatpush1.xpose.msra.mxu0 %v289
        %364 = vmatprep.subr.mxu0 0.0
        %365 = vmatpush1.xpose.msra.mxu0 %v288
        %366 = vmatprep.subr.mxu0 0.0
        %367 = vmatpush1.xpose.msra.mxu0 %v287
        %368 = vmatprep.subr.mxu0 0.0
        %369 = vmatpush1.xpose.msra.mxu0 %v286
        %370 = vmatprep.subr.mxu0 0.0
        %371 = vmatpush1.xpose.msra.mxu0 %v285
        %372 = vmatprep.subr.mxu0 0.0
        %373 = vmatpush1.xpose.msra.mxu0 %v284
        %374 = vmatprep.subr.mxu0 0.0
        %375 = vmatpush1.xpose.msra.mxu0 %v283
        %376 = vmatprep.subr.mxu0 0.0
        %377 = vmatpush1.xpose.msra.mxu0 %v282
        %378 = vmatprep.subr.mxu0 0.0
        %379 = vmatpush1.xpose.msra.mxu0 %v281
        %380 = vmatprep.subr.mxu0 0.0
        %381 = vmatpush2.xpose.msra.mxu0 0.0
        %382 = vmatprep.subr.mxu0 0.0
        %383 = vmatpush2.xpose.msra.mxu0 0.0
        %384 = vmatprep.subr.mxu0 0.0
        %385 = vmatpush2.xpose.msra.mxu0 0.0
        %386 = vmatprep.subr.mxu0 0.0
        %387 = vmatpush2.xpose.msra.mxu0 0.0
        %388 = vmatprep.subr.mxu0 0.0
        %389 = vmatpush2.xpose.msra.mxu0 0.0
        %390 = vmatprep.subr.mxu0 0.0
        %391 = vmatpush2.xpose.msra.mxu0 0.0
        %392 = vmatprep.subr.mxu0 0.0
        %393 = vmatpush2.xpose.msra.mxu0 0.0
        %394 = vmatprep.subr.mxu0 0.0
        %395 = vmatpush2.xpose.msra.mxu0 0.0
        %396 = vmatprep.subr.mxu0 0.0
        %397 = vmatpush2.xpose.msra.mxu0 0.0
        %398 = vmatprep.subr.mxu0 0.0
        %399 = vmatpush2.xpose.msra.mxu0 0.0
        %400 = vmatprep.subr.mxu0 0.0
        %401 = vmatpush2.xpose.msra.mxu0 0.0
        %402 = vmatprep.subr.mxu0 0.0
        %403 = vmatpush2.xpose.msra.mxu0 0.0
        %404 = vmatprep.subr.mxu0 0.0
        %405 = vmatpush2.xpose.msra.mxu0 0.0
        %406 = vmatprep.subr.mxu0 0.0
        %407 = vmatpush2.xpose.msra.mxu0 0.0
        %408 = vmatprep.subr.mxu0 0.0
        %409 = vmatpush2.xpose.msra.mxu0 0.0
        %410 = vmatprep.subr.mxu0 0.0
        %411 = vmatpush2.xpose.msra.mxu0 0.0
        %412 = vmatprep.mubr.f32.mxu0 0.0
        %413 = vmatmul.mubr.f32.gmra.mxu0 %v346
        %v414 = vpop.f32.mrf.mxu0
        %v415 = vadd.f32 %v347, %v414
        %v416 = vpop.f32.mrf.mxu0
        %417 = vdwg.mxu0
        %418 = vmatprep.subr.mxu0 0.0
        %419 = vmatpush1.xpose.msra.mxu0 %v312
        %420 = vmatprep.subr.mxu0 0.0
        %421 = vmatpush1.xpose.msra.mxu0 %v311
        %422 = vmatprep.subr.mxu0 0.0
        %423 = vmatpush1.xpose.msra.mxu0 %v310
        %424 = vmatprep.subr.mxu0 0.0
        %425 = vmatpush1.xpose.msra.mxu0 %v309
        %426 = vmatprep.subr.mxu0 0.0
        %427 = vmatpush1.xpose.msra.mxu0 %v308
        %428 = vmatprep.subr.mxu0 0.0
        %429 = vmatpush1.xpose.msra.mxu0 %v307
        %430 = vmatprep.subr.mxu0 0.0
        %431 = vmatpush1.xpose.msra.mxu0 %v306
        %432 = vmatprep.subr.mxu0 0.0
        %433 = vmatpush1.xpose.msra.mxu0 %v305
        %434 = vmatprep.subr.mxu0 0.0
        %435 = vmatpush1.xpose.msra.mxu0 %v304
        %436 = vmatprep.subr.mxu0 0.0
        %437 = vmatpush1.xpose.msra.mxu0 %v303
        %438 = vmatprep.subr.mxu0 0.0
        %439 = vmatpush1.xpose.msra.mxu0 %v302
        %440 = vmatprep.subr.mxu0 0.0
        %441 = vmatpush1.xpose.msra.mxu0 %v301
        %442 = vmatprep.subr.mxu0 0.0
        %443 = vmatpush1.xpose.msra.mxu0 %v300
        %444 = vmatprep.subr.mxu0 0.0
        %445 = vmatpush1.xpose.msra.mxu0 %v299
        %446 = vmatprep.subr.mxu0 0.0
        %447 = vmatpush1.xpose.msra.mxu0 %v298
        %448 = vmatprep.subr.mxu0 0.0
        %449 = vmatpush1.xpose.msra.mxu0 %v297
        %450 = vmatprep.subr.mxu0 0.0
        %451 = vmatpush2.xpose.msra.mxu0 0.0
        %452 = vmatprep.subr.mxu0 0.0
        %453 = vmatpush2.xpose.msra.mxu0 0.0
        %454 = vmatprep.subr.mxu0 0.0
        %455 = vmatpush2.xpose.msra.mxu0 0.0
        %456 = vmatprep.subr.mxu0 0.0
        %457 = vmatpush2.xpose.msra.mxu0 0.0
        %458 = vmatprep.subr.mxu0 0.0
        %459 = vmatpush2.xpose.msra.mxu0 0.0
        %460 = vmatprep.subr.mxu0 0.0
        %461 = vmatpush2.xpose.msra.mxu0 0.0
        %462 = vmatprep.subr.mxu0 0.0
        %463 = vmatpush2.xpose.msra.mxu0 0.0
        %464 = vmatprep.subr.mxu0 0.0
        %465 = vmatpush2.xpose.msra.mxu0 0.0
        %466 = vmatprep.subr.mxu0 0.0
        %467 = vmatpush2.xpose.msra.mxu0 0.0
        %468 = vmatprep.subr.mxu0 0.0
        %469 = vmatpush2.xpose.msra.mxu0 0.0
        %470 = vmatprep.subr.mxu0 0.0
        %471 = vmatpush2.xpose.msra.mxu0 0.0
        %472 = vmatprep.subr.mxu0 0.0
        %473 = vmatpush2.xpose.msra.mxu0 0.0
        %474 = vmatprep.subr.mxu0 0.0
        %475 = vmatpush2.xpose.msra.mxu0 0.0
        %476 = vmatprep.subr.mxu0 0.0
        %477 = vmatpush2.xpose.msra.mxu0 0.0
        %478 = vmatprep.subr.mxu0 0.0
        %479 = vmatpush2.xpose.msra.mxu0 0.0
        %480 = vmatprep.subr.mxu0 0.0
        %481 = vmatpush2.xpose.msra.mxu0 0.0
        %482 = vmatprep.mubr.f32.mxu0 0.0
        %483 = vmatmul.mubr.f32.gmra.mxu0 %v346
        %v484 = vpop.f32.mrf.mxu0
        %v485 = vadd.f32 %v347, %v484
        %v486 = vpop.f32.mrf.mxu0
        %487 = vdwg.mxu0
        %488 = vmatprep.subr.mxu0 0.0
        %489 = vmatpush1.xpose.msra.mxu0 %v328
        %490 = vmatprep.subr.mxu0 0.0
        %491 = vmatpush1.xpose.msra.mxu0 %v327
        %492 = vmatprep.subr.mxu0 0.0
        %493 = vmatpush1.xpose.msra.mxu0 %v326
        %494 = vmatprep.subr.mxu0 0.0
        %495 = vmatpush1.xpose.msra.mxu0 %v325
        %496 = vmatprep.subr.mxu0 0.0
        %497 = vmatpush1.xpose.msra.mxu0 %v324
        %498 = vmatprep.subr.mxu0 0.0
        %499 = vmatpush1.xpose.msra.mxu0 %v323
        %500 = vmatprep.subr.mxu0 0.0
        %501 = vmatpush1.xpose.msra.mxu0 %v322
        %502 = vmatprep.subr.mxu0 0.0
        %503 = vmatpush1.xpose.msra.mxu0 %v321
        %504 = vmatprep.subr.mxu0 0.0
        %505 = vmatpush1.xpose.msra.mxu0 %v320
        %506 = vmatprep.subr.mxu0 0.0
        %507 = vmatpush1.xpose.msra.mxu0 %v319
        %508 = vmatprep.subr.mxu0 0.0
        %509 = vmatpush1.xpose.msra.mxu0 %v318
        %510 = vmatprep.subr.mxu0 0.0
        %511 = vmatpush1.xpose.msra.mxu0 %v317
        %512 = vmatprep.subr.mxu0 0.0
        %513 = vmatpush1.xpose.msra.mxu0 %v316
        %514 = vmatprep.subr.mxu0 0.0
        %515 = vmatpush1.xpose.msra.mxu0 %v315
        %516 = vmatprep.subr.mxu0 0.0
        %517 = vmatpush1.xpose.msra.mxu0 %v314
        %518 = vmatprep.subr.mxu0 0.0
        %519 = vmatpush1.xpose.msra.mxu0 %v313
        %520 = vmatprep.subr.mxu0 0.0
        %521 = vmatpush2.xpose.msra.mxu0 0.0
        %522 = vmatprep.subr.mxu0 0.0
        %523 = vmatpush2.xpose.msra.mxu0 0.0
        %524 = vmatprep.subr.mxu0 0.0
        %525 = vmatpush2.xpose.msra.mxu0 0.0
        %526 = vmatprep.subr.mxu0 0.0
        %527 = vmatpush2.xpose.msra.mxu0 0.0
        %528 = vmatprep.subr.mxu0 0.0
        %529 = vmatpush2.xpose.msra.mxu0 0.0
        %530 = vmatprep.subr.mxu0 0.0
        %531 = vmatpush2.xpose.msra.mxu0 0.0
        %532 = vmatprep.subr.mxu0 0.0
        %533 = vmatpush2.xpose.msra.mxu0 0.0
        %534 = vmatprep.subr.mxu0 0.0
        %535 = vmatpush2.xpose.msra.mxu0 0.0
        %536 = vmatprep.subr.mxu0 0.0
        %537 = vmatpush2.xpose.msra.mxu0 0.0
        %538 = vmatprep.subr.mxu0 0.0
        %539 = vmatpush2.xpose.msra.mxu0 0.0
        %540 = vmatprep.subr.mxu0 0.0
        %541 = vmatpush2.xpose.msra.mxu0 0.0
        %542 = vmatprep.subr.mxu0 0.0
        %543 = vmatpush2.xpose.msra.mxu0 0.0
        %544 = vmatprep.subr.mxu0 0.0
        %545 = vmatpush2.xpose.msra.mxu0 0.0
        %546 = vmatprep.subr.mxu0 0.0
        %547 = vmatpush2.xpose.msra.mxu0 0.0
        %548 = vmatprep.subr.mxu0 0.0
        %549 = vmatpush2.xpose.msra.mxu0 0.0
        %550 = vmatprep.subr.mxu0 0.0
        %551 = vmatpush2.xpose.msra.mxu0 0.0
        %552 = vmatprep.mubr.f32.mxu0 0.0
        %553 = vmatmul.mubr.f32.gmra.mxu0 %v346
        %v554 = vpop.f32.mrf.mxu0
        %v555 = vadd.f32 %v347, %v554
        %v556 = vpop.f32.mrf.mxu0
        %557 = vdwg.mxu0
        %558 = vmatprep.subr.mxu0 0.0
        %559 = vmatpush1.xpose.msra.mxu0 %v344
        %560 = vmatprep.subr.mxu0 0.0
        %561 = vmatpush1.xpose.msra.mxu0 %v343
        %562 = vmatprep.subr.mxu0 0.0
        %563 = vmatpush1.xpose.msra.mxu0 %v342
        %564 = vmatprep.subr.mxu0 0.0
        %565 = vmatpush1.xpose.msra.mxu0 %v341
        %566 = vmatprep.subr.mxu0 0.0
        %567 = vmatpush1.xpose.msra.mxu0 %v340
        %568 = vmatprep.subr.mxu0 0.0
        %569 = vmatpush1.xpose.msra.mxu0 %v339
        %570 = vmatprep.subr.mxu0 0.0
        %571 = vmatpush1.xpose.msra.mxu0 %v338
        %572 = vmatprep.subr.mxu0 0.0
        %573 = vmatpush1.xpose.msra.mxu0 %v337
        %574 = vmatprep.subr.mxu0 0.0
        %575 = vmatpush1.xpose.msra.mxu0 %v336
        %576 = vmatprep.subr.mxu0 0.0
        %577 = vmatpush1.xpose.msra.mxu0 %v335
        %578 = vmatprep.subr.mxu0 0.0
        %579 = vmatpush1.xpose.msra.mxu0 %v334
        %580 = vmatprep.subr.mxu0 0.0
        %581 = vmatpush1.xpose.msra.mxu0 %v333
        %582 = vmatprep.subr.mxu0 0.0
        %583 = vmatpush1.xpose.msra.mxu0 %v332
        %584 = vmatprep.subr.mxu0 0.0
        %585 = vmatpush1.xpose.msra.mxu0 %v331
        %586 = vmatprep.subr.mxu0 0.0
        %587 = vmatpush1.xpose.msra.mxu0 %v330
        %588 = vmatprep.subr.mxu0 0.0
        %589 = vmatpush1.xpose.msra.mxu0 %v329
        %590 = vmatprep.subr.mxu0 0.0
        %591 = vmatpush2.xpose.msra.mxu0 0.0
        %592 = vmatprep.subr.mxu0 0.0
        %593 = vmatpush2.xpose.msra.mxu0 0.0
        %594 = vmatprep.subr.mxu0 0.0
        %595 = vmatpush2.xpose.msra.mxu0 0.0
        %596 = vmatprep.subr.mxu0 0.0
        %597 = vmatpush2.xpose.msra.mxu0 0.0
        %598 = vmatprep.subr.mxu0 0.0
        %599 = vmatpush2.xpose.msra.mxu0 0.0
        %600 = vmatprep.subr.mxu0 0.0
        %601 = vmatpush2.xpose.msra.mxu0 0.0
        %602 = vmatprep.subr.mxu0 0.0
        %603 = vmatpush2.xpose.msra.mxu0 0.0
        %604 = vmatprep.subr.mxu0 0.0
        %605 = vmatpush2.xpose.msra.mxu0 0.0
        %606 = vmatprep.subr.mxu0 0.0
        %607 = vmatpush2.xpose.msra.mxu0 0.0
        %608 = vmatprep.subr.mxu0 0.0
        %609 = vmatpush2.xpose.msra.mxu0 0.0
        %610 = vmatprep.subr.mxu0 0.0
        %611 = vmatpush2.xpose.msra.mxu0 0.0
        %612 = vmatprep.subr.mxu0 0.0
        %613 = vmatpush2.xpose.msra.mxu0 0.0
        %614 = vmatprep.subr.mxu0 0.0
        %615 = vmatpush2.xpose.msra.mxu0 0.0
        %616 = vmatprep.subr.mxu0 0.0
        %617 = vmatpush2.xpose.msra.mxu0 0.0
        %618 = vmatprep.subr.mxu0 0.0
        %619 = vmatpush2.xpose.msra.mxu0 0.0
        %620 = vmatprep.subr.mxu0 0.0
        %621 = vmatpush2.xpose.msra.mxu0 0.0
        %622 = vmatprep.mubr.f32.mxu0 0.0
        %623 = vmatmul.mubr.f32.gmra.mxu0 %v346
        %v624 = vpop.f32.mrf.mxu0
        %v625 = vadd.f32 %v347, %v624
        %v626 = vpop.f32.mrf.mxu0
        %627 = vdwg.mxu0
        %vm628 = vcmask 1040384
        %v629 = vsel %vm628, %v415, -inf
        %v630 = vsel %vm628, %v485, -inf
        %v631 = vsel %vm628, %v555, -inf
        %v632 = vsel %vm628, %v625, -inf
        %v633 = vmax.f32 %v629, %v630
        %v634 = vmax.f32 %v631, %v632
        %v635 = vmax.f32 %v633, %v634
        %v636 = vsub.f32 %v415, %v635
        %v637 = vsub.f32 %v485, %v635
        %v638 = vsub.f32 %v555, %v635
        %v639 = vsub.f32 %v625, %v635
        %v640 = vmul.f32 %v636, 1.442695
        %v641 = vpow.pop %v640
        %v642 = vmul.f32 %v637, 1.442695
        %v643 = vpow.pop %v642
        %v644 = vmul.f32 %v638, 1.442695
        %v645 = vpow.pop %v644
        %v646 = vmul.f32 %v639, 1.442695
        %v647 = vpow.pop %v646
        %v648 = vsel %vm628, %v641, 0.0
        %v649 = vsel %vm628, %v643, 0.0
        %v650 = vadd.f32 %v648, %v649
        %v651 = vsel %vm628, %v645, 0.0
        %v652 = vadd.f32 %v650, %v651
        %v653 = vsel %vm628, %v647, 0.0
        %v654 = vadd.f32 %v652, %v653
        %v655 = vrcp.pop %v654
        %v656 = vmul.f32 %v641, %v655
        %v657 = vmul.f32 %v643, %v655
        %v658 = vmul.f32 %v645, %v655
        %v659 = vmul.f32 %v647, %v655
        %660 = vst [vmem:[%s267] sm:$0x1] %v656
        %661 = vst [vmem:[%s267 + $0x1] sm:$0x1] %v657
        %662 = vst [vmem:[%s267 + $0x2] sm:$0x1] %v658
        %663 = vst [vmem:[%s267 + $0x3] sm:$0x1] %v659
        %v664 = vld [vmem:[#allocation6] sm:$0x1]
        %v665 = vld [vmem:[#allocation6 + $0x1] sm:$0x1]
        %v666 = vld [vmem:[#allocation6 + $0x2] sm:$0x1]
        %v667 = vld [vmem:[#allocation6 + $0x3] sm:$0x1]
        %668 = vmatprep.subr.mxu0 0.0
        %669 = vmatpush1.msra.mxu0 %v296
        %670 = vmatprep.subr.mxu0 0.0
        %671 = vmatpush1.msra.mxu0 %v295
        %672 = vmatprep.subr.mxu0 0.0
        %673 = vmatpush1.msra.mxu0 %v294
        %674 = vmatprep.subr.mxu0 0.0
        %675 = vmatpush1.msra.mxu0 %v293
        %676 = vmatprep.subr.mxu0 0.0
        %677 = vmatpush1.msra.mxu0 %v292
        %678 = vmatprep.subr.mxu0 0.0
        %679 = vmatpush1.msra.mxu0 %v291
        %680 = vmatprep.subr.mxu0 0.0
        %681 = vmatpush1.msra.mxu0 %v290
        %682 = vmatprep.subr.mxu0 0.0
        %683 = vmatpush1.msra.mxu0 %v289
        %684 = vmatprep.subr.mxu0 0.0
        %685 = vmatpush1.msra.mxu0 %v288
        %686 = vmatprep.subr.mxu0 0.0
        %687 = vmatpush1.msra.mxu0 %v287
        %688 = vmatprep.subr.mxu0 0.0
        %689 = vmatpush1.msra.mxu0 %v286
        %690 = vmatprep.subr.mxu0 0.0
        %691 = vmatpush1.msra.mxu0 %v285
        %692 = vmatprep.subr.mxu0 0.0
        %693 = vmatpush1.msra.mxu0 %v284
        %694 = vmatprep.subr.mxu0 0.0
        %695 = vmatpush1.msra.mxu0 %v283
        %696 = vmatprep.subr.mxu0 0.0
        %697 = vmatpush1.msra.mxu0 %v282
        %698 = vmatprep.subr.mxu0 0.0
        %699 = vmatpush1.msra.mxu0 %v281
        %700 = vmatprep.subr.mxu0 0.0
        %701 = vmatpush2.msra.mxu0 0.0
        %702 = vmatprep.subr.mxu0 0.0
        %703 = vmatpush2.msra.mxu0 0.0
        %704 = vmatprep.subr.mxu0 0.0
        %705 = vmatpush2.msra.mxu0 0.0
        %706 = vmatprep.subr.mxu0 0.0
        %707 = vmatpush2.msra.mxu0 0.0
        %708 = vmatprep.subr.mxu0 0.0
        %709 = vmatpush2.msra.mxu0 0.0
        %710 = vmatprep.subr.mxu0 0.0
        %711 = vmatpush2.msra.mxu0 0.0
        %712 = vmatprep.subr.mxu0 0.0
        %713 = vmatpush2.msra.mxu0 0.0
        %714 = vmatprep.subr.mxu0 0.0
        %715 = vmatpush2.msra.mxu0 0.0
        %716 = vmatprep.subr.mxu0 0.0
        %717 = vmatpush2.msra.mxu0 0.0
        %718 = vmatprep.subr.mxu0 0.0
        %719 = vmatpush2.msra.mxu0 0.0
        %720 = vmatprep.subr.mxu0 0.0
        %721 = vmatpush2.msra.mxu0 0.0
        %722 = vmatprep.subr.mxu0 0.0
        %723 = vmatpush2.msra.mxu0 0.0
        %724 = vmatprep.subr.mxu0 0.0
        %725 = vmatpush2.msra.mxu0 0.0
        %726 = vmatprep.subr.mxu0 0.0
        %727 = vmatpush2.msra.mxu0 0.0
        %728 = vmatprep.subr.mxu0 0.0
        %729 = vmatpush2.msra.mxu0 0.0
        %730 = vmatprep.subr.mxu0 0.0
        %731 = vmatpush2.msra.mxu0 0.0
        %732 = vmatprep.mubr.f32.mxu0 0.0
        %733 = vmatmul.mubr.f32.gmra.mxu0 %v656
        %v734 = vpop.f32.mrf.mxu0
        %v735 = vadd.f32 0.0, %v734
        %v736 = vpop.f32.mrf.mxu0
        %737 = vdwg.mxu0
        %738 = vmatprep.subr.mxu0 0.0
        %739 = vmatpush1.msra.mxu0 %v312
        %740 = vmatprep.subr.mxu0 0.0
        %741 = vmatpush1.msra.mxu0 %v311
        %742 = vmatprep.subr.mxu0 0.0
        %743 = vmatpush1.msra.mxu0 %v310
        %744 = vmatprep.subr.mxu0 0.0
        %745 = vmatpush1.msra.mxu0 %v309
        %746 = vmatprep.subr.mxu0 0.0
        %747 = vmatpush1.msra.mxu0 %v308
        %748 = vmatprep.subr.mxu0 0.0
        %749 = vmatpush1.msra.mxu0 %v307
        %750 = vmatprep.subr.mxu0 0.0
        %751 = vmatpush1.msra.mxu0 %v306
        %752 = vmatprep.subr.mxu0 0.0
        %753 = vmatpush1.msra.mxu0 %v305
        %754 = vmatprep.subr.mxu0 0.0
        %755 = vmatpush1.msra.mxu0 %v304
        %756 = vmatprep.subr.mxu0 0.0
        %757 = vmatpush1.msra.mxu0 %v303
        %758 = vmatprep.subr.mxu0 0.0
        %759 = vmatpush1.msra.mxu0 %v302
        %760 = vmatprep.subr.mxu0 0.0
        %761 = vmatpush1.msra.mxu0 %v301
        %762 = vmatprep.subr.mxu0 0.0
        %763 = vmatpush1.msra.mxu0 %v300
        %764 = vmatprep.subr.mxu0 0.0
        %765 = vmatpush1.msra.mxu0 %v299
        %766 = vmatprep.subr.mxu0 0.0
        %767 = vmatpush1.msra.mxu0 %v298
        %768 = vmatprep.subr.mxu0 0.0
        %769 = vmatpush1.msra.mxu0 %v297
        %770 = vmatprep.subr.mxu0 0.0
        %771 = vmatpush2.msra.mxu0 0.0
        %772 = vmatprep.subr.mxu0 0.0
        %773 = vmatpush2.msra.mxu0 0.0
        %774 = vmatprep.subr.mxu0 0.0
        %775 = vmatpush2.msra.mxu0 0.0
        %776 = vmatprep.subr.mxu0 0.0
        %777 = vmatpush2.msra.mxu0 0.0
        %778 = vmatprep.subr.mxu0 0.0
        %779 = vmatpush2.msra.mxu0 0.0
        %780 = vmatprep.subr.mxu0 0.0
        %781 = vmatpush2.msra.mxu0 0.0
        %782 = vmatprep.subr.mxu0 0.0
        %783 = vmatpush2.msra.mxu0 0.0
        %784 = vmatprep.subr.mxu0 0.0
        %785 = vmatpush2.msra.mxu0 0.0
        %786 = vmatprep.subr.mxu0 0.0
        %787 = vmatpush2.msra.mxu0 0.0
        %788 = vmatprep.subr.mxu0 0.0
        %789 = vmatpush2.msra.mxu0 0.0
        %790 = vmatprep.subr.mxu0 0.0
        %791 = vmatpush2.msra.mxu0 0.0
        %792 = vmatprep.subr.mxu0 0.0
        %793 = vmatpush2.msra.mxu0 0.0
        %794 = vmatprep.subr.mxu0 0.0
        %795 = vmatpush2.msra.mxu0 0.0
        %796 = vmatprep.subr.mxu0 0.0
        %797 = vmatpush2.msra.mxu0 0.0
        %798 = vmatprep.subr.mxu0 0.0
        %799 = vmatpush2.msra.mxu0 0.0
        %800 = vmatprep.subr.mxu0 0.0
        %801 = vmatpush2.msra.mxu0 0.0
        %802 = vmatprep.mubr.f32.mxu0 0.0
        %803 = vmatmul.mubr.f32.gmra.mxu0 %v657
        %v804 = vpop.f32.mrf.mxu0
        %v805 = vadd.f32 0.0, %v804
        %v806 = vpop.f32.mrf.mxu0
        %807 = vdwg.mxu0
        %808 = vmatprep.subr.mxu0 0.0
        %809 = vmatpush1.msra.mxu0 %v328
        %810 = vmatprep.subr.mxu0 0.0
        %811 = vmatpush1.msra.mxu0 %v327
        %812 = vmatprep.subr.mxu0 0.0
        %813 = vmatpush1.msra.mxu0 %v326
        %814 = vmatprep.subr.mxu0 0.0
        %815 = vmatpush1.msra.mxu0 %v325
        %816 = vmatprep.subr.mxu0 0.0
        %817 = vmatpush1.msra.mxu0 %v324
        %818 = vmatprep.subr.mxu0 0.0
        %819 = vmatpush1.msra.mxu0 %v323
        %820 = vmatprep.subr.mxu0 0.0
        %821 = vmatpush1.msra.mxu0 %v322
        %822 = vmatprep.subr.mxu0 0.0
        %823 = vmatpush1.msra.mxu0 %v321
        %824 = vmatprep.subr.mxu0 0.0
        %825 = vmatpush1.msra.mxu0 %v320
        %826 = vmatprep.subr.mxu0 0.0
        %827 = vmatpush1.msra.mxu0 %v319
        %828 = vmatprep.subr.mxu0 0.0
        %829 = vmatpush1.msra.mxu0 %v318
        %830 = vmatprep.subr.mxu0 0.0
        %831 = vmatpush1.msra.mxu0 %v317
        %832 = vmatprep.subr.mxu0 0.0
        %833 = vmatpush1.msra.mxu0 %v316
        %834 = vmatprep.subr.mxu0 0.0
        %835 = vmatpush1.msra.mxu0 %v315
        %836 = vmatprep.subr.mxu0 0.0
        %837 = vmatpush1.msra.mxu0 %v314
        %838 = vmatprep.subr.mxu0 0.0
        %839 = vmatpush1.msra.mxu0 %v313
        %840 = vmatprep.subr.mxu0 0.0
        %841 = vmatpush2.msra.mxu0 0.0
        %842 = vmatprep.subr.mxu0 0.0
        %843 = vmatpush2.msra.mxu0 0.0
        %844 = vmatprep.subr.mxu0 0.0
        %845 = vmatpush2.msra.mxu0 0.0
        %846 = vmatprep.subr.mxu0 0.0
        %847 = vmatpush2.msra.mxu0 0.0
        %848 = vmatprep.subr.mxu0 0.0
        %849 = vmatpush2.msra.mxu0 0.0
        %850 = vmatprep.subr.mxu0 0.0
        %851 = vmatpush2.msra.mxu0 0.0
        %852 = vmatprep.subr.mxu0 0.0
        %853 = vmatpush2.msra.mxu0 0.0
        %854 = vmatprep.subr.mxu0 0.0
        %855 = vmatpush2.msra.mxu0 0.0
        %856 = vmatprep.subr.mxu0 0.0
        %857 = vmatpush2.msra.mxu0 0.0
        %858 = vmatprep.subr.mxu0 0.0
        %859 = vmatpush2.msra.mxu0 0.0
        %860 = vmatprep.subr.mxu0 0.0
        %861 = vmatpush2.msra.mxu0 0.0
        %862 = vmatprep.subr.mxu0 0.0
        %863 = vmatpush2.msra.mxu0 0.0
        %864 = vmatprep.subr.mxu0 0.0
        %865 = vmatpush2.msra.mxu0 0.0
        %866 = vmatprep.subr.mxu0 0.0
        %867 = vmatpush2.msra.mxu0 0.0
        %868 = vmatprep.subr.mxu0 0.0
        %869 = vmatpush2.msra.mxu0 0.0
        %870 = vmatprep.subr.mxu0 0.0
        %871 = vmatpush2.msra.mxu0 0.0
        %872 = vmatprep.mubr.f32.mxu0 0.0
        %873 = vmatmul.mubr.f32.gmra.mxu0 %v658
        %v874 = vpop.f32.mrf.mxu0
        %v875 = vadd.f32 0.0, %v874
        %v876 = vpop.f32.mrf.mxu0
        %877 = vdwg.mxu0
        %878 = vmatprep.subr.mxu0 0.0
        %879 = vmatpush1.msra.mxu0 %v344
        %880 = vmatprep.subr.mxu0 0.0
        %881 = vmatpush1.msra.mxu0 %v343
        %882 = vmatprep.subr.mxu0 0.0
        %883 = vmatpush1.msra.mxu0 %v342
        %884 = vmatprep.subr.mxu0 0.0
        %885 = vmatpush1.msra.mxu0 %v341
        %886 = vmatprep.subr.mxu0 0.0
        %887 = vmatpush1.msra.mxu0 %v340
        %888 = vmatprep.subr.mxu0 0.0
        %889 = vmatpush1.msra.mxu0 %v339
        %890 = vmatprep.subr.mxu0 0.0
        %891 = vmatpush1.msra.mxu0 %v338
        %892 = vmatprep.subr.mxu0 0.0
        %893 = vmatpush1.msra.mxu0 %v337
        %894 = vmatprep.subr.mxu0 0.0
        %895 = vmatpush1.msra.mxu0 %v336
        %896 = vmatprep.subr.mxu0 0.0
        %897 = vmatpush1.msra.mxu0 %v335
        %898 = vmatprep.subr.mxu0 0.0
        %899 = vmatpush1.msra.mxu0 %v334
        %900 = vmatprep.subr.mxu0 0.0
        %901 = vmatpush1.msra.mxu0 %v333
        %902 = vmatprep.subr.mxu0 0.0
        %903 = vmatpush1.msra.mxu0 %v332
        %904 = vmatprep.subr.mxu0 0.0
        %905 = vmatpush1.msra.mxu0 %v331
        %906 = vmatprep.subr.mxu0 0.0
        %907 = vmatpush1.msra.mxu0 %v330
        %908 = vmatprep.subr.mxu0 0.0
        %909 = vmatpush1.msra.mxu0 %v329
        %910 = vmatprep.subr.mxu0 0.0
        %911 = vmatpush2.msra.mxu0 0.0
        %912 = vmatprep.subr.mxu0 0.0
        %913 = vmatpush2.msra.mxu0 0.0
        %914 = vmatprep.subr.mxu0 0.0
        %915 = vmatpush2.msra.mxu0 0.0
        %916 = vmatprep.subr.mxu0 0.0
        %917 = vmatpush2.msra.mxu0 0.0
        %918 = vmatprep.subr.mxu0 0.0
        %919 = vmatpush2.msra.mxu0 0.0
        %920 = vmatprep.subr.mxu0 0.0
        %921 = vmatpush2.msra.mxu0 0.0
        %922 = vmatprep.subr.mxu0 0.0
        %923 = vmatpush2.msra.mxu0 0.0
        %924 = vmatprep.subr.mxu0 0.0
        %925 = vmatpush2.msra.mxu0 0.0
        %926 = vmatprep.subr.mxu0 0.0
        %927 = vmatpush2.msra.mxu0 0.0
        %928 = vmatprep.subr.mxu0 0.0
        %929 = vmatpush2.msra.mxu0 0.0
        %930 = vmatprep.subr.mxu0 0.0
        %931 = vmatpush2.msra.mxu0 0.0
        %932 = vmatprep.subr.mxu0 0.0
        %933 = vmatpush2.msra.mxu0 0.0
        %934 = vmatprep.subr.mxu0 0.0
        %935 = vmatpush2.msra.mxu0 0.0
        %936 = vmatprep.subr.mxu0 0.0
        %937 = vmatpush2.msra.mxu0 0.0
        %938 = vmatprep.subr.mxu0 0.0
        %939 = vmatpush2.msra.mxu0 0.0
        %940 = vmatprep.subr.mxu0 0.0
        %941 = vmatpush2.msra.mxu0 0.0
        %942 = vmatprep.mubr.f32.mxu0 0.0
        %943 = vmatmul.mubr.f32.gmra.mxu0 %v659
        %v944 = vpop.f32.mrf.mxu0
        %v945 = vadd.f32 0.0, %v944
        %v946 = vpop.f32.mrf.mxu0
        %947 = vdwg.mxu0
        %v948 = vadd.f32 %v664, %v735
        %v949 = vadd.f32 %v665, %v805
        %v950 = vadd.f32 %v666, %v875
        %v951 = vadd.f32 %v667, %v945
        %952 = vst [vmem:[#allocation6] sm:$0x1] %v948
        %953 = vst [vmem:[#allocation6 + $0x1] sm:$0x1] %v949
        %954 = vst [vmem:[#allocation6 + $0x2] sm:$0x1] %v950
        %955 = vst [vmem:[#allocation6 + $0x3] sm:$0x1] %v951
        %s956 = sand.u32 %s146, 1
        %s957 = scalar_lea.sflag [#allocation8], %s956
        %s958 = sand.u32 %s146, 1
        %s959 = smul.addr %s958, 4
        %s960 = scalar_lea.vmem [#allocation7], %s959
        // Predicated region
        $region41: #{tpu_custom_call.1} parent=31 // pred_check
          %p961 = pneg %p126
        $region42: #{tpu_custom_call.1} parent=31 // pred_check_branch
          %963 = sbr.rel (%p961) target = $region44
        $region43: #{tpu_custom_call.1} parent=31 // pred_region
          %s965 = ssub.s32 64, 64
          %966 = vsyncadd [#allocation5], %s965
          %s967 = smul.addr %s28, 4
          %s968 = smul.addr %s967, 16
          %s969 = scalar_lea.hbm %s3, %s968
          %s970 = sshll.u32 [#allocation6], 4
          %s971 = int_to_ptr.vmem [resolvable:$true] %s970
          %976 = dma.vmem_to_hbm [thread:$0]  %s971, 64, %s969, [#allocation5], 16, 16, 1
        $region44: #{tpu_custom_call.1} parent=31 // pred_fallthru
          _
        // Predicated region
        $region45: #{tpu_custom_call.1} parent=31 // pred_check
          %p977 = pneg %p156
        $region46: #{tpu_custom_call.1} parent=31 // pred_check_branch
          %979 = sbr.rel (%p977) target = $region48
        $region47: #{tpu_custom_call.1} parent=31 // pred_region
          %s980 = smul.u32 %s28, 4
          %s981 = sadd.s32 %s980, %s29
          %s983 = ssub.s32 64, 64
          %984 = vsyncadd %s957, %s983
          %s985 = smul.addr %s981, 16
          %s986 = scalar_lea.hbm %s4, %s985
          %s987 = sshll.u32 %s960, 4
          %s988 = int_to_ptr.vmem [resolvable:$true] %s987
          %993 = dma.vmem_to_hbm [thread:$0]  %s988, 64, %s986, %s957, 16, 64, 1
        $region48: #{tpu_custom_call.1} parent=31 // pred_fallthru
          _
        // Predicated region
        $region49: #{tpu_custom_call.1} parent=31 // pred_check
          %p994 = pneg %p126
        $region50: #{tpu_custom_call.1} parent=31 // pred_check_branch
          %996 = sbr.rel (%p994) target = $region52
        $region51: #{tpu_custom_call.1} parent=31 // pred_region
          %997 = dma.done [#allocation5], 64
        $region52: #{tpu_custom_call.1} parent=31 // pred_fallthru
          _
      $region32: #{tpu_custom_call.1} parent=5 // pred_fallthru
        _
      %p998 = scmp.le.s32.totalorder 2, %s19
      // Predicated region
      $region53: #{tpu_custom_call.1} parent=5 // pred_check
        %p999 = pneg %p998
      $region54: #{tpu_custom_call.1} parent=5 // pred_check_branch
        %1001 = sbr.rel (%p999) target = $region56
      $region55: #{tpu_custom_call.1} parent=5 // pred_region
        %s1002 = ssub.s32 %s19, 2
        // Predicated region
        $region57: #{tpu_custom_call.1} parent=55 // pred_check
          %p1003 = pneg %p162
        $region58: #{tpu_custom_call.1} parent=55 // pred_check_branch
          %1005 = sbr.rel (%p1003) target = $region60
        $region59: #{tpu_custom_call.1} parent=55 // pred_region
          %s1006 = sand.u32 %s147, 1
          %s1007 = scalar_lea.sflag [#allocation8], %s1006
          %s1008 = sand.u32 %s147, 1
          %s1009 = smul.addr %s1008, 4
          %s1010 = scalar_lea.vmem [#allocation7], %s1009
          %1011 = dma.done %s1007, 64
        $region60: #{tpu_custom_call.1} parent=55 // pred_fallthru
          _
      $region56: #{tpu_custom_call.1} parent=5 // pred_fallthru
        _
    $region6: #{tpu_custom_call.1} parent=1 // loop_footer
      %s23 = sadd.s32 1, %s19
    $region7: #{tpu_custom_call.1} parent=1 // loop_footer_branch
      %18 = sbr.rel target = $region3
    $region8: #{tpu_custom_call.1} parent=1 // loop_exit
      _
    %1012 = vsyncpa [#allocation4], 1
    %s1013 = scalar_lea.sflag [#allocation4], 1
    %1014 = vsyncpa %s1013, 1
    %1015 = vsyncpa [#allocation5], 1
    %s1016 = scalar_lea.sflag [#allocation5], 1
    %1017 = vsyncpa %s1016, 1
    %1018 = vsyncpa [#allocation8], 1
    %s1019 = scalar_lea.sflag [#allocation8], 1
    %1020 = vsyncpa %s1019, 1

</llo_original>
